<compile_context>
chip_gen: v5e
topology: v5e:2x2
jax: 0.10.0
libtpu: 0.0.40
codegen_flags: <defaults>
</compile_context>

<pallas_src>
import jax
import jax.numpy as jnp
from jax.experimental import pallas as pl
from jax.experimental.pallas import tpu as pltpu

LANE = 128  # TPU lane width


def _round_up(n, m):
    return (n + m - 1) // m * m


def dqn_kernel(x_ref, w1_ref, b1_ref, w2_ref, b2_ref, w3_ref, b3_ref, o_ref):
    # One batch tile per grid step. Weights/biases use a constant index_map so
    # they stay VMEM-resident across grid steps; only activations stream.
    # Matmuls run in the weights' dtype (bf16 or f32) with f32 accumulation;
    # bias-add / ReLU stay in f32 on the VPU.
    cdt = w1_ref.dtype
    x = x_ref[...].astype(cdt)
    h1 = jnp.dot(x, w1_ref[...], preferred_element_type=jnp.float32) + b1_ref[...]
    h1 = jnp.maximum(h1, 0.0).astype(cdt)
    h2 = jnp.dot(h1, w2_ref[...], preferred_element_type=jnp.float32) + b2_ref[...]
    h2 = jnp.maximum(h2, 0.0).astype(cdt)
    out = jnp.dot(h2, w3_ref[...], preferred_element_type=jnp.float32) + b3_ref[...]
    o_ref[...] = out.astype(o_ref.dtype)  # (tile_b, out_dim) store, no lane padding


def init_params(key, layer_size):
    """Deterministic init matching nn.Linear (stored transposed: (in, out))."""
    keys = jax.random.split(key, 6)
    params = []
    for i in range(3):
        fan_in, fan_out = layer_size[i], layer_size[i + 1]
        bound = 1.0 / jnp.sqrt(jnp.float32(fan_in))
        w = jax.random.uniform(keys[2 * i], (fan_in, fan_out),
                               minval=-bound, maxval=bound, dtype=jnp.float32)
        b = jax.random.uniform(keys[2 * i + 1], (1, fan_out),
                               minval=-bound, maxval=bound, dtype=jnp.float32)
        params += [w, b]
    return tuple(params)


def prepare_params(params, compute_dtype=jnp.bfloat16):
    """Pad HIDDEN feature dims to 128 lanes; keep input and output dims unpadded.

    Zero padding of hidden units is numerically exact: ReLU(0 + 0) = 0 feeding
    zero weight rows downstream.  Weights are cast once to `compute_dtype`
    (bf16 default -> MXU with f32 accumulation; pass jnp.float32 for exact
    PyTorch fp32 semantics).  Biases stay f32.  Call once; reuse per forward.
    """
    w1, b1, w2, b2, w3, b3 = params
    h1, h2 = w1.shape[1], w2.shape[1]
    h1_p = _round_up(h1, LANE)
    h2_p = _round_up(h2, LANE)

    w1_p = jnp.pad(w1, ((0, 0), (0, h1_p - h1))).astype(compute_dtype)
    b1_p = jnp.pad(b1, ((0, 0), (0, h1_p - h1)))
    w2_p = jnp.pad(w2, ((0, h1_p - h1), (0, h2_p - h2))).astype(compute_dtype)
    b2_p = jnp.pad(b2, ((0, 0), (0, h2_p - h2)))
    w3_p = jnp.pad(w3, ((0, h2_p - h2), (0, 0))).astype(compute_dtype)  # out dim unpadded
    b3_p = b3
    return (w1_p, b1_p, w2_p, b2_p, w3_p, b3_p)


def dqn_forward(x, prepared, *, grid_steps=2, max_tile_b=8192):
    """x: (B, D_in) f32. prepared: output of prepare_params. Returns (B, out_dim) f32.

    grid_steps=2 gives one batch tile per TensorCore on v7x (parallel axis);
    the extra grid step costs ~0.35us on single-TC v5e/v6e, which is negligible.
    max_tile_b keeps the VMEM footprint a few MiB even on v7x (64 MiB VMEM).
    """
    w1, b1, w2, b2, w3, b3 = prepared
    B, d_in = x.shape
    out_dim = w3.shape[1]

    # Tile so the grid has ~grid_steps steps; round to sublane multiple of 8.
    tile_b = max(8, min(max_tile_b, _round_up(-(-B // grid_steps), 8)))
    b_pad = _round_up(B, tile_b)
    if b_pad != B:
        x = jnp.pad(x, ((0, b_pad - B), (0, 0)))
    grid = (b_pad // tile_b,)

    resident = lambda shape: pl.BlockSpec(shape, lambda i: (0, 0))

    itemsize = lambda a: a.size * a.dtype.itemsize
    cost = pl.CostEstimate(
        flops=2 * b_pad * (d_in * w1.shape[1] + w1.shape[1] * w2.shape[1]
                           + w2.shape[1] * out_dim),
        transcendentals=0,
        bytes_accessed=(b_pad * d_in * 4 + b_pad * out_dim * 4
                        + sum(itemsize(a) for a in (w1, b1, w2, b2, w3, b3))),
    )

    out = pl.pallas_call(
        dqn_kernel,
        out_shape=jax.ShapeDtypeStruct((b_pad, out_dim), jnp.float32),
        grid=grid,
        in_specs=[
            pl.BlockSpec((tile_b, d_in), lambda i: (i, 0)),  # streamed activations
            resident(w1.shape), resident(b1.shape),          # VMEM-resident params
            resident(w2.shape), resident(b2.shape),
            resident(w3.shape), resident(b3.shape),
        ],
        out_specs=pl.BlockSpec((tile_b, out_dim), lambda i: (i, 0)),  # unpadded output
        compiler_params=pltpu.CompilerParams(
            dimension_semantics=("parallel",)),  # megacore sharding on v7x
        cost_estimate=cost,
    )(x, w1, b1, w2, b2, w3, b3)
    return out if b_pad == B else out[:B]


def dqn_reference(x, params):
    w1, b1, w2, b2, w3, b3 = params
    h1 = jnp.maximum(x @ w1 + b1, 0.0)
    h2 = jnp.maximum(h1 @ w2 + b2, 0.0)
    return h2 @ w3 + b3


if __name__ == "__main__":
    layer_size = [32, 64, 64, 8]   # [in, hidden1, hidden2, n_actions]
    batch = 100                    # not a tile multiple -> exercises row padding/slice

    key = jax.random.PRNGKey(0)
    k_x, k_p = jax.random.split(key)
    x = jax.random.normal(k_x, (batch, layer_size[0]), dtype=jnp.float32)
    params = init_params(k_p, layer_size)
    ref = dqn_reference(x, params)  # full-f32 reference (PyTorch semantics)

    # Default path: bf16 MXU matmuls with f32 accumulation.
    prepared_bf16 = prepare_params(params)
    out = jax.block_until_ready(dqn_forward(x, prepared_bf16))
    assert out.shape == (batch, layer_size[3])
    assert jnp.allclose(out, ref, atol=2e-2, rtol=2e-2), (
        f"bf16 path max abs err {jnp.max(jnp.abs(out - ref))}")

    # Exact-precision path (addresses the bf16 correctness concern for trained weights).
    prepared_f32 = prepare_params(params, compute_dtype=jnp.float32)
    out_f32 = jax.block_until_ready(dqn_forward(x, prepared_f32))
    assert jnp.allclose(out_f32, ref, atol=1e-5, rtol=1e-5), (
        f"f32 path max abs err {jnp.max(jnp.abs(out_f32 - ref))}")

    print("KERNEL_OK")
</pallas_src>

<mosaic_0001>
module attributes {stable_mosaic.version = 11 : i64} {
  func.func @dqn_kernel(%arg0: i32, %arg1: memref<56x32xf32, #tpu.memory_space<vmem>>, %arg2: memref<32x128xbf16, #tpu.memory_space<vmem>>, %arg3: memref<1x128xf32, #tpu.memory_space<vmem>>, %arg4: memref<128x128xbf16, #tpu.memory_space<vmem>>, %arg5: memref<1x128xf32, #tpu.memory_space<vmem>>, %arg6: memref<128x8xbf16, #tpu.memory_space<vmem>>, %arg7: memref<1x8xf32, #tpu.memory_space<vmem>>, %arg8: memref<56x8xf32, #tpu.memory_space<vmem>>) attributes {dimension_semantics = [#tpu.dimension_semantics<parallel>], iteration_bounds = array<i64: 2>, scalar_prefetch = 0 : i64, scratch_operands = 0 : i64, tpu.core_type = #tpu.core_type<tc>, window_params = [{transform_indices = @transform_0, window_bounds = array<i64: 56, 32>}, {pipeline_mode = #tpu.pipeline_mode<synchronous>, transform_indices = @transform_1, window_bounds = array<i64: 32, 128>}, {pipeline_mode = #tpu.pipeline_mode<synchronous>, transform_indices = @transform_2, window_bounds = array<i64: 1, 128>}, {pipeline_mode = #tpu.pipeline_mode<synchronous>, transform_indices = @transform_3, window_bounds = array<i64: 128, 128>}, {pipeline_mode = #tpu.pipeline_mode<synchronous>, transform_indices = @transform_4, window_bounds = array<i64: 1, 128>}, {pipeline_mode = #tpu.pipeline_mode<synchronous>, transform_indices = @transform_5, window_bounds = array<i64: 128, 8>}, {pipeline_mode = #tpu.pipeline_mode<synchronous>, transform_indices = @transform_6, window_bounds = array<i64: 1, 8>}, {transform_indices = @transform_7, window_bounds = array<i64: 56, 8>}]} {
    %c0 = arith.constant 0 : index
    %c0_0 = arith.constant 0 : index
    %0 = vector.load %arg1[%c0, %c0_0] : memref<56x32xf32, #tpu.memory_space<vmem>>, vector<56x32xf32>
    %1 = arith.truncf %0 : vector<56x32xf32> to vector<56x32xbf16>
    %c0_1 = arith.constant 0 : index
    %c0_2 = arith.constant 0 : index
    %2 = vector.load %arg2[%c0_1, %c0_2] : memref<32x128xbf16, #tpu.memory_space<vmem>>, vector<32x128xbf16>
    %cst = arith.constant dense<0.000000e+00> : vector<56x128xf32>
    %3 = tpu.matmul %1, %2, %cst {dimension_numbers = #tpu.dot_dimension_numbers<[1], [0], [0], [1], [0, 0, 1, 1], [], []>} : vector<56x32xbf16>, vector<32x128xbf16>, vector<56x128xf32> -> vector<56x128xf32>
    %c0_3 = arith.constant 0 : index
    %c0_4 = arith.constant 0 : index
    %4 = vector.load %arg3[%c0_3, %c0_4] : memref<1x128xf32, #tpu.memory_space<vmem>>, vector<1x128xf32>
    %5 = vector.broadcast %4 : vector<1x128xf32> to vector<56x128xf32>
    %6 = arith.addf %3, %5 : vector<56x128xf32>
    %cst_5 = arith.constant 0.000000e+00 : f32
    %7 = vector.broadcast %cst_5 : f32 to vector<56x128xf32>
    %8 = arith.maximumf %6, %7 : vector<56x128xf32>
    %9 = arith.truncf %8 : vector<56x128xf32> to vector<56x128xbf16>
    %c0_6 = arith.constant 0 : index
    %c0_7 = arith.constant 0 : index
    %10 = vector.load %arg4[%c0_6, %c0_7] : memref<128x128xbf16, #tpu.memory_space<vmem>>, vector<128x128xbf16>
    %cst_8 = arith.constant dense<0.000000e+00> : vector<56x128xf32>
    %11 = tpu.matmul %9, %10, %cst_8 {dimension_numbers = #tpu.dot_dimension_numbers<[1], [0], [0], [1], [0, 0, 1, 1], [], []>} : vector<56x128xbf16>, vector<128x128xbf16>, vector<56x128xf32> -> vector<56x128xf32>
    %c0_9 = arith.constant 0 : index
    %c0_10 = arith.constant 0 : index
    %12 = vector.load %arg5[%c0_9, %c0_10] : memref<1x128xf32, #tpu.memory_space<vmem>>, vector<1x128xf32>
    %13 = vector.broadcast %12 : vector<1x128xf32> to vector<56x128xf32>
    %14 = arith.addf %11, %13 : vector<56x128xf32>
    %cst_11 = arith.constant 0.000000e+00 : f32
    %15 = vector.broadcast %cst_11 : f32 to vector<56x128xf32>
    %16 = arith.maximumf %14, %15 : vector<56x128xf32>
    %17 = arith.truncf %16 : vector<56x128xf32> to vector<56x128xbf16>
    %c0_12 = arith.constant 0 : index
    %c0_13 = arith.constant 0 : index
    %18 = vector.load %arg6[%c0_12, %c0_13] : memref<128x8xbf16, #tpu.memory_space<vmem>>, vector<128x8xbf16>
    %cst_14 = arith.constant dense<0.000000e+00> : vector<56x8xf32>
    %19 = tpu.matmul %17, %18, %cst_14 {dimension_numbers = #tpu.dot_dimension_numbers<[1], [0], [0], [1], [0, 0, 1, 1], [], []>} : vector<56x128xbf16>, vector<128x8xbf16>, vector<56x8xf32> -> vector<56x8xf32>
    %c0_15 = arith.constant 0 : index
    %c0_16 = arith.constant 0 : index
    %20 = vector.load %arg7[%c0_15, %c0_16] : memref<1x8xf32, #tpu.memory_space<vmem>>, vector<1x8xf32>
    %21 = vector.broadcast %20 : vector<1x8xf32> to vector<56x8xf32>
    %22 = arith.addf %19, %21 : vector<56x8xf32>
    %c0_17 = arith.constant 0 : index
    %c0_18 = arith.constant 0 : index
    %23 = vector.load %arg8[%c0_17, %c0_18] : memref<56x8xf32, #tpu.memory_space<vmem>>, vector<56x8xf32>
    tpu.vector_store %arg8[%c0_17, %c0_18], %22 {strides = array<i32>} : memref<56x8xf32, #tpu.memory_space<vmem>>, vector<56x8xf32>,
    return
  }
  func.func @transform_0(%arg0: i32) -> (i32, i32) {
    %c0_i32 = arith.constant 0 : i32
    %c0_i32_0 = arith.constant 0 : i32
    return %arg0, %c0_i32 : i32, i32
  }
  func.func @transform_1(%arg0: i32) -> (i32, i32) {
    %c0_i32 = arith.constant 0 : i32
    %c0_i32_0 = arith.constant 0 : i32
    %c0_i32_1 = arith.constant 0 : i32
    return %c0_i32, %c0_i32_0 : i32, i32
  }
  func.func @transform_2(%arg0: i32) -> (i32, i32) {
    %c0_i32 = arith.constant 0 : i32
    %c0_i32_0 = arith.constant 0 : i32
    %c0_i32_1 = arith.constant 0 : i32
    return %c0_i32, %c0_i32_0 : i32, i32
  }
  func.func @transform_3(%arg0: i32) -> (i32, i32) {
    %c0_i32 = arith.constant 0 : i32
    %c0_i32_0 = arith.constant 0 : i32
    %c0_i32_1 = arith.constant 0 : i32
    return %c0_i32, %c0_i32_0 : i32, i32
  }
  func.func @transform_4(%arg0: i32) -> (i32, i32) {
    %c0_i32 = arith.constant 0 : i32
    %c0_i32_0 = arith.constant 0 : i32
    %c0_i32_1 = arith.constant 0 : i32
    return %c0_i32, %c0_i32_0 : i32, i32
  }
  func.func @transform_5(%arg0: i32) -> (i32, i32) {
    %c0_i32 = arith.constant 0 : i32
    %c0_i32_0 = arith.constant 0 : i32
    %c0_i32_1 = arith.constant 0 : i32
    return %c0_i32, %c0_i32_0 : i32, i32
  }
  func.func @transform_6(%arg0: i32) -> (i32, i32) {
    %c0_i32 = arith.constant 0 : i32
    %c0_i32_0 = arith.constant 0 : i32
    %c0_i32_1 = arith.constant 0 : i32
    return %c0_i32, %c0_i32_0 : i32, i32
  }
  func.func @transform_7(%arg0: i32) -> (i32, i32) {
    %c0_i32 = arith.constant 0 : i32
    %c0_i32_0 = arith.constant 0 : i32
    return %arg0, %c0_i32 : i32, i32
  }
}

</mosaic_0001>

<llo_original>
// kernel: tpu_custom_call.1
$region0: #{tpu_custom_call.1}
  #allocation0 [shape = 'u32[]', space=smem, size = 0x4, offset = 0x4, fixed_abs, tag = 'smem constant byte address 0x4 - core index']
  #allocation1 [shape = 'u32[72,128]{1,0:T(1,128)}', space=vmem, size = 0x9000, scoped, tag = 'internal scratch']
  %s0 = inlined_call_operand.vmem [shape: f32[112,32], index: 0, kind: input, shape index: {}]
  %s1 = inlined_call_operand.vmem [shape: bf16[32,128], index: 1, kind: input, shape index: {}]
  %s2 = inlined_call_operand.vmem [shape: f32[1,128], index: 2, kind: input, shape index: {}]
  %s3 = inlined_call_operand.vmem [shape: bf16[128,128], index: 3, kind: input, shape index: {}]
  %s4 = inlined_call_operand.vmem [shape: f32[1,128], index: 4, kind: input, shape index: {}]
  %s5 = inlined_call_operand.vmem [shape: bf16[128,8], index: 5, kind: input, shape index: {}]
  %s6 = inlined_call_operand.vmem [shape: f32[1,8], index: 6, kind: input, shape index: {}]
  %s7 = inlined_call_operand.vmem [shape: f32[112,8], index: 7, kind: output, shape index: {}]
  %s8 = sld [smem:[#allocation0]]
  $region61: #{tpu_custom_call.1} parent=0
    _
  %s10 = ssub.s32 1, %s8
  %s11 = scalar_select 0, %s10, %s8
  loop: start=0, step=1, limit=4
  $region2: #{tpu_custom_call.1} parent=0 // loop_pre_header
    _
  $region3: #{tpu_custom_call.1} parent=0 // loop_header
    %s13 = sphi 0, %s17
    %p14 = scmp.ge.s32.totalorder %s13, 4
    %s23 = sphi 0, %s25
    %s26 = sphi 0, %s23
    %s27 = sphi 0, %s26
    %s43 = sphi 0, %s27
    %s47 = sphi 0, %s47
    %s49 = sphi 0, %s47
    %s50 = sphi 0, %s49
    %s64 = sphi 0, %s50
    %s68 = sphi 0, %s68
    %s70 = sphi 0, %s68
    %s71 = sphi 0, %s70
    %s85 = sphi 0, %s71
    %s89 = sphi 0, %s89
    %s91 = sphi 0, %s89
    %s92 = sphi 0, %s91
    %s106 = sphi 0, %s92
    %s110 = sphi 0, %s110
    %s112 = sphi 0, %s110
    %s113 = sphi 0, %s112
    %s127 = sphi 0, %s113
    %s131 = sphi 0, %s131
    %s133 = sphi 0, %s131
    %s134 = sphi 0, %s133
    %s148 = sphi 0, %s134
    %s152 = sphi 0, %s152
    %s154 = sphi 0, %s152
    %s155 = sphi 0, %s154
    %s169 = sphi 0, %s155
    %s175 = sphi 0, %s177
    %s178 = sphi 0, %s175
    %s179 = sphi 0, %s178
    %s195 = sphi 0, %s179
  $region4: #{tpu_custom_call.1} parent=0 // loop_header_branch
    %16 = sbr.rel (%p14) target = $region8
  $region5: #{tpu_custom_call.1} parent=0 // loop_body
    %s18 = ssub.s32 %s13, 1
    %s19 = ssub.s32 %s13, 2
    %s20 = sadd.s32 %s13, 1
    %s21 = ssub.s32 %s13, %s20
    %p22 = scmp.eq.s32.totalorder %s21, 0
    %s24 = sadd.s32 %s23, 1
    %s25 = scalar_select %p22, %s23, %s24
    %p28 = pneg %p22
    %p29 = scmp.eq.s32.totalorder %s13, 1
    %p30 = por %p28, %p29
    %p31 = scmp.ne.s32.totalorder %s23, %s26
    %p32 = scmp.eq.s32.totalorder %s13, 0
    %p33 = por %p31, %p32
    %p34 = scmp.ne.s32.totalorder %s23, %s26
    %p35 = scmp.eq.s32.totalorder %s18, 1
    %p36 = por %p34, %p35
    %p37 = scmp.ne.s32.totalorder %s26, %s27
    %p38 = scmp.eq.s32.totalorder %s18, 0
    %p39 = por %p37, %p38
    %p40 = scmp.ne.s32.totalorder %s26, %s27
    %p41 = scmp.eq.s32.totalorder %s19, 1
    %p42 = por %p40, %p41
    %p44 = scmp.ne.s32.totalorder %s27, %s43
    %p45 = scmp.eq.s32.totalorder %s19, 0
    %p46 = por %p44, %p45
    %s48 = sadd.s32 %s47, 1
    %p51 = scmp.eq.s32.totalorder %s13, 1
    %p52 = scmp.ne.s32.totalorder %s47, %s49
    %p53 = scmp.eq.s32.totalorder %s13, 0
    %p54 = por %p52, %p53
    %p55 = scmp.ne.s32.totalorder %s47, %s49
    %p56 = scmp.eq.s32.totalorder %s18, 1
    %p57 = por %p55, %p56
    %p58 = scmp.ne.s32.totalorder %s49, %s50
    %p59 = scmp.eq.s32.totalorder %s18, 0
    %p60 = por %p58, %p59
    %p61 = scmp.ne.s32.totalorder %s49, %s50
    %p62 = scmp.eq.s32.totalorder %s19, 1
    %p63 = por %p61, %p62
    %p65 = scmp.ne.s32.totalorder %s50, %s64
    %p66 = scmp.eq.s32.totalorder %s19, 0
    %p67 = por %p65, %p66
    %s69 = sadd.s32 %s68, 1
    %p72 = scmp.eq.s32.totalorder %s13, 1
    %p73 = scmp.ne.s32.totalorder %s68, %s70
    %p74 = scmp.eq.s32.totalorder %s13, 0
    %p75 = por %p73, %p74
    %p76 = scmp.ne.s32.totalorder %s68, %s70
    %p77 = scmp.eq.s32.totalorder %s18, 1
    %p78 = por %p76, %p77
    %p79 = scmp.ne.s32.totalorder %s70, %s71
    %p80 = scmp.eq.s32.totalorder %s18, 0
    %p81 = por %p79, %p80
    %p82 = scmp.ne.s32.totalorder %s70, %s71
    %p83 = scmp.eq.s32.totalorder %s19, 1
    %p84 = por %p82, %p83
    %p86 = scmp.ne.s32.totalorder %s71, %s85
    %p87 = scmp.eq.s32.totalorder %s19, 0
    %p88 = por %p86, %p87
    %s90 = sadd.s32 %s89, 1
    %p93 = scmp.eq.s32.totalorder %s13, 1
    %p94 = scmp.ne.s32.totalorder %s89, %s91
    %p95 = scmp.eq.s32.totalorder %s13, 0
    %p96 = por %p94, %p95
    %p97 = scmp.ne.s32.totalorder %s89, %s91
    %p98 = scmp.eq.s32.totalorder %s18, 1
    %p99 = por %p97, %p98
    %p100 = scmp.ne.s32.totalorder %s91, %s92
    %p101 = scmp.eq.s32.totalorder %s18, 0
    %p102 = por %p100, %p101
    %p103 = scmp.ne.s32.totalorder %s91, %s92
    %p104 = scmp.eq.s32.totalorder %s19, 1
    %p105 = por %p103, %p104
    %p107 = scmp.ne.s32.totalorder %s92, %s106
    %p108 = scmp.eq.s32.totalorder %s19, 0
    %p109 = por %p107, %p108
    %s111 = sadd.s32 %s110, 1
    %p114 = scmp.eq.s32.totalorder %s13, 1
    %p115 = scmp.ne.s32.totalorder %s110, %s112
    %p116 = scmp.eq.s32.totalorder %s13, 0
    %p117 = por %p115, %p116
    %p118 = scmp.ne.s32.totalorder %s110, %s112
    %p119 = scmp.eq.s32.totalorder %s18, 1
    %p120 = por %p118, %p119
    %p121 = scmp.ne.s32.totalorder %s112, %s113
    %p122 = scmp.eq.s32.totalorder %s18, 0
    %p123 = por %p121, %p122
    %p124 = scmp.ne.s32.totalorder %s112, %s113
    %p125 = scmp.eq.s32.totalorder %s19, 1
    %p126 = por %p124, %p125
    %p128 = scmp.ne.s32.totalorder %s113, %s127
    %p129 = scmp.eq.s32.totalorder %s19, 0
    %p130 = por %p128, %p129
    %s132 = sadd.s32 %s131, 1
    %p135 = scmp.eq.s32.totalorder %s13, 1
    %p136 = scmp.ne.s32.totalorder %s131, %s133
    %p137 = scmp.eq.s32.totalorder %s13, 0
    %p138 = por %p136, %p137
    %p139 = scmp.ne.s32.totalorder %s131, %s133
    %p140 = scmp.eq.s32.totalorder %s18, 1
    %p141 = por %p139, %p140
    %p142 = scmp.ne.s32.totalorder %s133, %s134
    %p143 = scmp.eq.s32.totalorder %s18, 0
    %p144 = por %p142, %p143
    %p145 = scmp.ne.s32.totalorder %s133, %s134
    %p146 = scmp.eq.s32.totalorder %s19, 1
    %p147 = por %p145, %p146
    %p149 = scmp.ne.s32.totalorder %s134, %s148
    %p150 = scmp.eq.s32.totalorder %s19, 0
    %p151 = por %p149, %p150
    %s153 = sadd.s32 %s152, 1
    %p156 = scmp.eq.s32.totalorder %s13, 1
    %p157 = scmp.ne.s32.totalorder %s152, %s154
    %p158 = scmp.eq.s32.totalorder %s13, 0
    %p159 = por %p157, %p158
    %p160 = scmp.ne.s32.totalorder %s152, %s154
    %p161 = scmp.eq.s32.totalorder %s18, 1
    %p162 = por %p160, %p161
    %p163 = scmp.ne.s32.totalorder %s154, %s155
    %p164 = scmp.eq.s32.totalorder %s18, 0
    %p165 = por %p163, %p164
    %p166 = scmp.ne.s32.totalorder %s154, %s155
    %p167 = scmp.eq.s32.totalorder %s19, 1
    %p168 = por %p166, %p167
    %p170 = scmp.ne.s32.totalorder %s155, %s169
    %p171 = scmp.eq.s32.totalorder %s19, 0
    %p172 = por %p170, %p171
    %s173 = ssub.s32 %s13, %s20
    %p174 = scmp.eq.s32.totalorder %s173, 0
    %s176 = sadd.s32 %s175, 1
    %s177 = scalar_select %p174, %s175, %s176
    %p180 = pneg %p174
    %p181 = scmp.eq.s32.totalorder %s13, 1
    %p182 = por %p180, %p181
    %p183 = scmp.ne.s32.totalorder %s175, %s178
    %p184 = scmp.eq.s32.totalorder %s13, 0
    %p185 = por %p183, %p184
    %p186 = scmp.ne.s32.totalorder %s175, %s178
    %p187 = scmp.eq.s32.totalorder %s18, 1
    %p188 = por %p186, %p187
    %p189 = scmp.ne.s32.totalorder %s178, %s179
    %p190 = scmp.eq.s32.totalorder %s18, 0
    %p191 = por %p189, %p190
    %p192 = scmp.ne.s32.totalorder %s178, %s179
    %p193 = scmp.eq.s32.totalorder %s19, 1
    %p194 = por %p192, %p193
    %p196 = scmp.ne.s32.totalorder %s179, %s195
    %p197 = scmp.eq.s32.totalorder %s19, 0
    %p198 = por %p196, %p197
    %p199 = scmp.le.s32.totalorder 1, %s13
    %p200 = scmp.lt.s32.totalorder %s13, 3
    %p201 = pnand %p199, %p200
    %p202 = pneg %p201
    // Predicated region
    $region9: #{tpu_custom_call.1} parent=5 // pred_check
      _
    $region10: #{tpu_custom_call.1} parent=5 // pred_check_branch
      %204 = sbr.rel (%p201) target = $region12
    $region11: #{tpu_custom_call.1} parent=5 // pred_region
      %s205 = ssub.s32 %s13, 1
      // Predicated region
      $region13: #{tpu_custom_call.1} parent=11 // pred_check
        %p206 = pneg %p60
      $region14: #{tpu_custom_call.1} parent=11 // pred_check_branch
        %208 = sbr.rel (%p206) target = $region16
      $region15: #{tpu_custom_call.1} parent=11 // pred_region
        _
      $region16: #{tpu_custom_call.1} parent=11 // pred_fallthru
        _
      // Predicated region
      $region17: #{tpu_custom_call.1} parent=11 // pred_check
        %p209 = pneg %p81
      $region18: #{tpu_custom_call.1} parent=11 // pred_check_branch
        %211 = sbr.rel (%p209) target = $region20
      $region19: #{tpu_custom_call.1} parent=11 // pred_region
        _
      $region20: #{tpu_custom_call.1} parent=11 // pred_fallthru
        _
      // Predicated region
      $region21: #{tpu_custom_call.1} parent=11 // pred_check
        %p212 = pneg %p102
      $region22: #{tpu_custom_call.1} parent=11 // pred_check_branch
        %214 = sbr.rel (%p212) target = $region24
      $region23: #{tpu_custom_call.1} parent=11 // pred_region
        _
      $region24: #{tpu_custom_call.1} parent=11 // pred_fallthru
        _
      // Predicated region
      $region25: #{tpu_custom_call.1} parent=11 // pred_check
        %p215 = pneg %p123
      $region26: #{tpu_custom_call.1} parent=11 // pred_check_branch
        %217 = sbr.rel (%p215) target = $region28
      $region27: #{tpu_custom_call.1} parent=11 // pred_region
        _
      $region28: #{tpu_custom_call.1} parent=11 // pred_fallthru
        _
      // Predicated region
      $region29: #{tpu_custom_call.1} parent=11 // pred_check
        %p218 = pneg %p144
      $region30: #{tpu_custom_call.1} parent=11 // pred_check_branch
        %220 = sbr.rel (%p218) target = $region32
      $region31: #{tpu_custom_call.1} parent=11 // pred_region
        _
      $region32: #{tpu_custom_call.1} parent=11 // pred_fallthru
        _
      // Predicated region
      $region33: #{tpu_custom_call.1} parent=11 // pred_check
        %p221 = pneg %p165
      $region34: #{tpu_custom_call.1} parent=11 // pred_check_branch
        %223 = sbr.rel (%p221) target = $region36
      $region35: #{tpu_custom_call.1} parent=11 // pred_region
        _
      $region36: #{tpu_custom_call.1} parent=11 // pred_fallthru
        _
    $region12: #{tpu_custom_call.1} parent=5 // pred_fallthru
      _
    %p224 = scmp.lt.s32.totalorder %s13, 2
    // Predicated region
    $region37: #{tpu_custom_call.1} parent=5 // pred_check
      %p225 = pneg %p224
    $region38: #{tpu_custom_call.1} parent=5 // pred_check_branch
      %227 = sbr.rel (%p225) target = $region40
    $region39: #{tpu_custom_call.1} parent=5 // pred_region
      // Predicated region
      $region41: #{tpu_custom_call.1} parent=39 // pred_check
        %p228 = pneg %p33
      $region42: #{tpu_custom_call.1} parent=39 // pred_check_branch
        %230 = sbr.rel (%p228) target = $region44
      $region43: #{tpu_custom_call.1} parent=39 // pred_region
        %s231 = smul.u32 7, %s13
        %p232 = scmp.lt.s32.totalorder %s231, 13
        %s233 = scalar_select %p232, %s231, 13
        %s234 = smul.addr %s233, 8
        %s235 = scalar_lea.vmem %s0, %s234
        %s236 = smul.u32 7, %s13
      $region44: #{tpu_custom_call.1} parent=39 // pred_fallthru
        _
    $region40: #{tpu_custom_call.1} parent=5 // pred_fallthru
      _
    %p237 = scmp.le.s32.totalorder 1, %s13
    %p238 = scmp.lt.s32.totalorder %s13, 3
    %p239 = pnand %p237, %p238
    %p240 = pneg %p239
    // Predicated region
    $region45: #{tpu_custom_call.1} parent=5 // pred_check
      _
    $region46: #{tpu_custom_call.1} parent=5 // pred_check_branch
      %242 = sbr.rel (%p239) target = $region48
    $region47: #{tpu_custom_call.1} parent=5 // pred_region
      %s243 = ssub.s32 %s13, 1
      %s244 = smul.u32 7, %s18
      %p245 = scmp.lt.s32.totalorder %s244, 13
      %s246 = scalar_select %p245, %s244, 13
      %s247 = smul.addr %s246, 8
      %s248 = scalar_lea.vmem %s0, %s247
      %p249 = pneg %p39
      %p250 = pneg %p36
      %p251 = pneg %p60
      %p252 = pneg %p57
      %p253 = pneg %p81
      %p254 = pneg %p78
      %p255 = pneg %p102
      %p256 = pneg %p99
      %p257 = pneg %p123
      %p258 = pneg %p120
      %p259 = pneg %p144
      %p260 = pneg %p141
      %p261 = pneg %p165
      %p262 = pneg %p162
      %p263 = pneg %p191
      %p264 = pneg %p188
      %s265 = smul.u32 7, %s18
      %p266 = scmp.lt.s32.totalorder %s265, 13
      %s267 = scalar_select %p266, %s265, 13
      %s268 = smul.addr %s267, 8
      %s269 = scalar_lea.vmem %s7, %s268
      %s270 = smul.u32 7, %s18
      %p271 = scmp.lt.s32.totalorder %s270, 13
      %s272 = scalar_select %p271, %s270, 13
      %s273 = smul.addr %s272, 8
      %s274 = scalar_lea.vmem %s0, %s273
      %s275 = smul.u32 7, %s18
      %s276 = smul.u32 7, %s18
      %p277 = scmp.lt.s32.totalorder %s276, 13
      %s278 = scalar_select %p277, %s276, 13
      %s279 = smul.addr %s278, 8
      %s280 = scalar_lea.vmem %s7, %s279
      %s281 = smul.u32 7, %s18
      %v283 = vld [vmem:[%s274] sm:$0xff]
      %v284 = vld [vmem:[%s274 + $0x8] sm:$0xff]
      %v285 = vld [vmem:[%s274 + $0x10] sm:$0xff]
      %v286 = vld [vmem:[%s274 + $0x18] sm:$0xff]
      %v287 = vld [vmem:[%s274 + $0x20] sm:$0xff]
      %v288 = vld [vmem:[%s274 + $0x28] sm:$0xff]
      %v289 = vld [vmem:[%s274 + $0x30] sm:$0xff]
      %v290 = vpack.c.bf16 %v284, %v283
      %v291 = vpack.c.bf16 %v286, %v285
      %v292 = vpack.c.bf16 %v288, %v287
      %v293 = vpack.c.bf16 %v289, %v289
      %v294 = vld [vmem:[%s1] sm:$0xf]
      %v295 = vld [vmem:[%s1 + $0x4] sm:$0xf]
      %v296 = vld [vmem:[%s1 + $0x8] sm:$0xf]
      %v297 = vld [vmem:[%s1 + $0xc] sm:$0xf]
      %v298 = vld [vmem:[%s2] sm:$0x1]
      %v300 = vperm.slane %v298, 0
      %v306 = vunpack.c.l.b16 %v294
      %v307 = vunpack.c.l.b16 %v295
      %v308 = vunpack.c.l.b16 %v296
      %v309 = vunpack.c.l.b16 %v297
      %v310 = vpack.c.b16 %v307, %v306
      %v311 = vpack.c.b16 %v309, %v308
      %vm314 = vcmask 261120
      %v316 = vsel %vm314, %v290, 0
      %v319 = vsel %vm314, %v291, 0
      %v322 = vsel %vm314, %v292, 0
      %v325 = vsel %vm314, %v293, 0
      %327 = vmatpush.bf16.msra.mxu0 0
      %328 = vmatpush.bf16.msra.mxu0 0
      %329 = vmatpush.bf16.msra.mxu0 0
      %330 = vmatpush.bf16.msra.mxu0 0
      %331 = vmatpush.bf16.msra.mxu0 0
      %332 = vmatpush.bf16.msra.mxu0 0
      %333 = vmatpush.bf16.msra.mxu0 %v311
      %334 = vmatpush.bf16.msra.mxu0 %v310
      %335 = vmatmul.bf16.gmra.mxu0 %v316
      %v336 = vpop.f32.mrf.mxu0
      %v337 = vadd.f32 %v300, %v336
      %v338 = vpop.f32.mrf.mxu0
      %v339 = vadd.f32 %v300, %v338
      %340 = vmatmul.bf16.gmra.mxu0 %v319
      %v341 = vpop.f32.mrf.mxu0
      %v342 = vadd.f32 %v300, %v341
      %v343 = vpop.f32.mrf.mxu0
      %v344 = vadd.f32 %v300, %v343
      %345 = vmatmul.bf16.gmra.mxu0 %v322
      %v346 = vpop.f32.mrf.mxu0
      %v347 = vadd.f32 %v300, %v346
      %v348 = vpop.f32.mrf.mxu0
      %v349 = vadd.f32 %v300, %v348
      %350 = vmatmul.bf16.gmra.mxu0 %v325
      %v351 = vpop.f32.mrf.mxu0
      %v352 = vadd.f32 %v300, %v351
      %v353 = vpop.f32.mrf.mxu0
      %354 = vdwg.mxu0
      %v355 = vmax.f32 %v337, 0.0
      %v356 = vmax.f32 %v339, 0.0
      %v357 = vmax.f32 %v342, 0.0
      %v358 = vmax.f32 %v344, 0.0
      %v359 = vmax.f32 %v347, 0.0
      %v360 = vmax.f32 %v349, 0.0
      %v361 = vmax.f32 %v352, 0.0
      %v362 = vpack.c.bf16 %v356, %v355
      %v363 = vpack.c.bf16 %v358, %v357
      %v364 = vpack.c.bf16 %v360, %v359
      %v365 = vpack.c.bf16 %v361, %v361
      %v366 = vld [vmem:[%s3] sm:$0xf]
      %v367 = vld [vmem:[%s3 + $0x4] sm:$0xf]
      %v368 = vld [vmem:[%s3 + $0x8] sm:$0xf]
      %v369 = vld [vmem:[%s3 + $0xc] sm:$0xf]
      %v370 = vld [vmem:[%s3 + $0x10] sm:$0xf]
      %v371 = vld [vmem:[%s3 + $0x14] sm:$0xf]
      %v372 = vld [vmem:[%s3 + $0x18] sm:$0xf]
      %v373 = vld [vmem:[%s3 + $0x1c] sm:$0xf]
      %v374 = vld [vmem:[%s3 + $0x20] sm:$0xf]
      %v375 = vld [vmem:[%s3 + $0x24] sm:$0xf]
      %v376 = vld [vmem:[%s3 + $0x28] sm:$0xf]
      %v377 = vld [vmem:[%s3 + $0x2c] sm:$0xf]
      %v378 = vld [vmem:[%s3 + $0x30] sm:$0xf]
      %v379 = vld [vmem:[%s3 + $0x34] sm:$0xf]
      %v380 = vld [vmem:[%s3 + $0x38] sm:$0xf]
      %v381 = vld [vmem:[%s3 + $0x3c] sm:$0xf]
      %v382 = vld [vmem:[%s4] sm:$0x1]
      %v384 = vperm.slane %v382, 0
      %v402 = vunpack.c.l.b16 %v366
      %v403 = vunpack.c.l.b16 %v367
      %v404 = vunpack.c.l.b16 %v368
      %v405 = vunpack.c.l.b16 %v369
      %v406 = vunpack.c.l.b16 %v370
      %v407 = vunpack.c.l.b16 %v371
      %v408 = vunpack.c.l.b16 %v372
      %v409 = vunpack.c.l.b16 %v373
      %v410 = vunpack.c.l.b16 %v374
      %v411 = vunpack.c.l.b16 %v375
      %v412 = vunpack.c.l.b16 %v376
      %v413 = vunpack.c.l.b16 %v377
      %v414 = vunpack.c.l.b16 %v378
      %v415 = vunpack.c.l.b16 %v379
      %v416 = vunpack.c.l.b16 %v380
      %v417 = vunpack.c.l.b16 %v381
      %v418 = vpack.c.b16 %v403, %v402
      %v419 = vpack.c.b16 %v405, %v404
      %v420 = vpack.c.b16 %v407, %v406
      %v421 = vpack.c.b16 %v409, %v408
      %v422 = vpack.c.b16 %v411, %v410
      %v423 = vpack.c.b16 %v413, %v412
      %v424 = vpack.c.b16 %v415, %v414
      %v425 = vpack.c.b16 %v417, %v416
      %434 = vmatpush.bf16.msra.mxu0 %v425
      %435 = vmatpush.bf16.msra.mxu0 %v424
      %436 = vmatpush.bf16.msra.mxu0 %v423
      %437 = vmatpush.bf16.msra.mxu0 %v422
      %438 = vmatpush.bf16.msra.mxu0 %v421
      %439 = vmatpush.bf16.msra.mxu0 %v420
      %440 = vmatpush.bf16.msra.mxu0 %v419
      %441 = vmatpush.bf16.msra.mxu0 %v418
      %442 = vmatmul.bf16.gmra.mxu0 %v362
      %v443 = vpop.f32.mrf.mxu0
      %v444 = vadd.f32 %v384, %v443
      %v445 = vpop.f32.mrf.mxu0
      %v446 = vadd.f32 %v384, %v445
      %447 = vmatmul.bf16.gmra.mxu0 %v363
      %v448 = vpop.f32.mrf.mxu0
      %v449 = vadd.f32 %v384, %v448
      %v450 = vpop.f32.mrf.mxu0
      %v451 = vadd.f32 %v384, %v450
      %452 = vmatmul.bf16.gmra.mxu0 %v364
      %v453 = vpop.f32.mrf.mxu0
      %v454 = vadd.f32 %v384, %v453
      %v455 = vpop.f32.mrf.mxu0
      %v456 = vadd.f32 %v384, %v455
      %457 = vmatmul.bf16.gmra.mxu0 %v365
      %v458 = vpop.f32.mrf.mxu0
      %v459 = vadd.f32 %v384, %v458
      %v460 = vpop.f32.mrf.mxu0
      %461 = vdwg.mxu0
      %v462 = vmax.f32 %v444, 0.0
      %v463 = vmax.f32 %v446, 0.0
      %v464 = vmax.f32 %v449, 0.0
      %v465 = vmax.f32 %v451, 0.0
      %v466 = vmax.f32 %v454, 0.0
      %v467 = vmax.f32 %v456, 0.0
      %v468 = vmax.f32 %v459, 0.0
      %v469 = vpack.c.bf16 %v463, %v462
      %v470 = vpack.c.bf16 %v465, %v464
      %v471 = vpack.c.bf16 %v467, %v466
      %v472 = vpack.c.bf16 %v468, %v468
      %v473 = vld [vmem:[%s5] sm:$0xf]
      %v474 = vld [vmem:[%s5 + $0x4] sm:$0xf]
      %v475 = vld [vmem:[%s5 + $0x8] sm:$0xf]
      %v476 = vld [vmem:[%s5 + $0xc] sm:$0xf]
      %v477 = vld [vmem:[%s5 + $0x10] sm:$0xf]
      %v478 = vld [vmem:[%s5 + $0x14] sm:$0xf]
      %v479 = vld [vmem:[%s5 + $0x18] sm:$0xf]
      %v480 = vld [vmem:[%s5 + $0x1c] sm:$0xf]
      %v481 = vld [vmem:[%s5 + $0x20] sm:$0xf]
      %v482 = vld [vmem:[%s5 + $0x24] sm:$0xf]
      %v483 = vld [vmem:[%s5 + $0x28] sm:$0xf]
      %v484 = vld [vmem:[%s5 + $0x2c] sm:$0xf]
      %v485 = vld [vmem:[%s5 + $0x30] sm:$0xf]
      %v486 = vld [vmem:[%s5 + $0x34] sm:$0xf]
      %v487 = vld [vmem:[%s5 + $0x38] sm:$0xf]
      %v488 = vld [vmem:[%s5 + $0x3c] sm:$0xf]
      %v489 = vld [vmem:[%s6] sm:$0x1]
      %v491 = vperm.slane %v489, 0
      %v509 = vunpack.c.l.b16 %v473
      %v510 = vunpack.c.l.b16 %v474
      %v511 = vunpack.c.l.b16 %v475
      %v512 = vunpack.c.l.b16 %v476
      %v513 = vunpack.c.l.b16 %v477
      %v514 = vunpack.c.l.b16 %v478
      %v515 = vunpack.c.l.b16 %v479
      %v516 = vunpack.c.l.b16 %v480
      %v517 = vunpack.c.l.b16 %v481
      %v518 = vunpack.c.l.b16 %v482
      %v519 = vunpack.c.l.b16 %v483
      %v520 = vunpack.c.l.b16 %v484
      %v521 = vunpack.c.l.b16 %v485
      %v522 = vunpack.c.l.b16 %v486
      %v523 = vunpack.c.l.b16 %v487
      %v524 = vunpack.c.l.b16 %v488
      %v525 = vpack.c.b16 %v510, %v509
      %v526 = vpack.c.b16 %v512, %v511
      %v527 = vpack.c.b16 %v514, %v513
      %v528 = vpack.c.b16 %v516, %v515
      %v529 = vpack.c.b16 %v518, %v517
      %v530 = vpack.c.b16 %v520, %v519
      %v531 = vpack.c.b16 %v522, %v521
      %v532 = vpack.c.b16 %v524, %v523
      %541 = vmatpush.bf16.msra.mxu0 %v532
      %542 = vmatpush.bf16.msra.mxu0 %v531
      %543 = vmatpush.bf16.msra.mxu0 %v530
      %544 = vmatpush.bf16.msra.mxu0 %v529
      %545 = vmatpush.bf16.msra.mxu0 %v528
      %546 = vmatpush.bf16.msra.mxu0 %v527
      %547 = vmatpush.bf16.msra.mxu0 %v526
      %548 = vmatpush.bf16.msra.mxu0 %v525
      %549 = vmatmul.bf16.gmra.mxu0 %v469
      %v550 = vpop.f32.mrf.mxu0
      %v551 = vadd.f32 %v491, %v550
      %v552 = vpop.f32.mrf.mxu0
      %v553 = vadd.f32 %v491, %v552
      %554 = vmatmul.bf16.gmra.mxu0 %v470
      %v555 = vpop.f32.mrf.mxu0
      %v556 = vadd.f32 %v491, %v555
      %v557 = vpop.f32.mrf.mxu0
      %v558 = vadd.f32 %v491, %v557
      %559 = vmatmul.bf16.gmra.mxu0 %v471
      %v560 = vpop.f32.mrf.mxu0
      %v561 = vadd.f32 %v491, %v560
      %v562 = vpop.f32.mrf.mxu0
      %v563 = vadd.f32 %v491, %v562
      %564 = vmatmul.bf16.gmra.mxu0 %v472
      %v565 = vpop.f32.mrf.mxu0
      %v566 = vadd.f32 %v491, %v565
      %v567 = vpop.f32.mrf.mxu0
      %568 = vdwg.mxu0
      %vm569 = vcmask 64512
      %570 = vst.msk [vmem:[%s280] sm:$0xff] %vm569, %v551
      %571 = vst.msk [vmem:[%s280 + $0x8] sm:$0xff] %vm569, %v553
      %572 = vst.msk [vmem:[%s280 + $0x10] sm:$0xff] %vm569, %v556
      %573 = vst.msk [vmem:[%s280 + $0x18] sm:$0xff] %vm569, %v558
      %574 = vst.msk [vmem:[%s280 + $0x20] sm:$0xff] %vm569, %v561
      %575 = vst.msk [vmem:[%s280 + $0x28] sm:$0xff] %vm569, %v563
      %576 = vst.msk [vmem:[%s280 + $0x30] sm:$0xff] %vm569, %v566
      %s577 = smul.u32 7, %s18
      %p578 = scmp.lt.s32.totalorder %s577, 13
      %s579 = scalar_select %p578, %s577, 13
      %s580 = smul.addr %s579, 8
      %s581 = scalar_lea.vmem %s7, %s580
      // Predicated region
      $region49: #{tpu_custom_call.1} parent=47 // pred_check
        %p582 = pneg %p188
      $region50: #{tpu_custom_call.1} parent=47 // pred_check_branch
        %584 = sbr.rel (%p582) target = $region52
      $region51: #{tpu_custom_call.1} parent=47 // pred_region
        %s585 = smul.u32 7, %s18
      $region52: #{tpu_custom_call.1} parent=47 // pred_fallthru
        _
    $region48: #{tpu_custom_call.1} parent=5 // pred_fallthru
      _
    %p586 = scmp.le.s32.totalorder 2, %s13
    // Predicated region
    $region53: #{tpu_custom_call.1} parent=5 // pred_check
      %p587 = pneg %p586
    $region54: #{tpu_custom_call.1} parent=5 // pred_check_branch
      %589 = sbr.rel (%p587) target = $region56
    $region55: #{tpu_custom_call.1} parent=5 // pred_region
      %s590 = ssub.s32 %s13, 2
      // Predicated region
      $region57: #{tpu_custom_call.1} parent=55 // pred_check
        %p591 = pneg %p194
      $region58: #{tpu_custom_call.1} parent=55 // pred_check_branch
        %593 = sbr.rel (%p591) target = $region60
      $region59: #{tpu_custom_call.1} parent=55 // pred_region
        %s594 = smul.u32 7, %s19
        %p595 = scmp.lt.s32.totalorder %s594, 13
        %s596 = scalar_select %p595, %s594, 13
        %s597 = smul.addr %s596, 8
        %s598 = scalar_lea.vmem %s7, %s597
      $region60: #{tpu_custom_call.1} parent=55 // pred_fallthru
        _
    $region56: #{tpu_custom_call.1} parent=5 // pred_fallthru
      _
  $region6: #{tpu_custom_call.1} parent=0 // loop_footer
    %s17 = sadd.s32 1, %s13
  $region7: #{tpu_custom_call.1} parent=0 // loop_footer_branch
    %12 = sbr.rel target = $region3
  $region8: #{tpu_custom_call.1} parent=0 // loop_exit
    _

</llo_original>
